<compile_context>
chip_gen: v7x
topology: tpu7x:2x2x1
jax: 0.10.0
libtpu: 0.0.40
codegen_flags: <defaults>
</compile_context>

<pallas_src>
import functools

import jax
import jax.numpy as jnp
from jax.experimental import pallas as pl
from jax.experimental.pallas import tpu as pltpu

FEAT_COUNT = 768
LN_EPS = 1e-5


def _round_up(x, m):
    return ((x + m - 1) // m) * m


# ----------------------------------------------------------------------------
# Fused kernel: one row-tile through the entire network + skip-concat
# ----------------------------------------------------------------------------
def _fused_append_net_kernel(*refs, num_hidden_layers):
    """refs = [x_ref, (w,b,gamma,beta) * L, w_final, b_final, o_ref]."""
    x_ref = refs[0]
    o_ref = refs[-1]

    x = x_ref[...]                                  # (tm, 768), kept for the skip-concat
    compute_dtype = refs[1].dtype                   # dtype of the first weight matrix
    h = x.astype(compute_dtype)                     # single cast before the first dot

    idx = 1
    for _ in range(num_hidden_layers):
        w_ref, b_ref, g_ref, bt_ref = refs[idx:idx + 4]
        idx += 4
        # MXU matmul; bf16 weights -> bf16 activations in, f32 accumulate out.
        z = jnp.dot(h, w_ref[...], preferred_element_type=jnp.float32)
        z = z + b_ref[...].astype(jnp.float32)
        z = jnp.maximum(z, 0.0)                     # ReLU
        # One-pass LayerNorm statistics: var = E[z^2] - E[z]^2 (one fewer XLU pass).
        mean = jnp.mean(z, axis=-1, keepdims=True)
        mean_sq = jnp.mean(z * z, axis=-1, keepdims=True)
        var = jnp.maximum(mean_sq - mean * mean, 0.0)
        inv = jax.lax.rsqrt(var + LN_EPS)           # EUP rsqrt (free slot)
        hn = (z - mean) * inv
        hn = hn * g_ref[...].astype(jnp.float32) + bt_ref[...].astype(jnp.float32)
        # Exactly one cast per layer: keep inter-layer activation in the weight
        # dtype (bf16 fast path) to halve cast work and vreg pressure.
        h = hn.astype(compute_dtype)
        # TODO(synk): training-mode dropout (pltpu.prng_random_bits mask) not implemented;
        #             this matches nn.Dropout in eval() mode (identity).

    wf_ref, bf_ref = refs[idx], refs[idx + 1]
    emb = jnp.dot(h, wf_ref[...], preferred_element_type=jnp.float32)
    emb = emb + bf_ref[...].astype(jnp.float32)

    # Fused skip-concat: out = [x | emb]. 768 is a multiple of 128 -> lane-aligned writes.
    o_ref[:, :FEAT_COUNT] = x.astype(o_ref.dtype)
    o_ref[:, FEAT_COUNT:] = emb.astype(o_ref.dtype)


# ----------------------------------------------------------------------------
# Wrapper: single pallas_call, row-tiled grid, weights resident in VMEM
# ----------------------------------------------------------------------------
@functools.partial(jax.jit, static_argnames=("tm_cap",))
def append_net_forward(params, x, *, tm_cap=256):
    B, fin = x.shape
    assert fin == FEAT_COUNT, fin
    hidden = params["hidden"]
    wf, bf = params["final"]
    num_hidden_nodes = hidden[0][0].shape[1] if hidden else FEAT_COUNT
    embed_size = wf.shape[1]
    out_width = FEAT_COUNT + embed_size

    # Lane-dense widths: non-128-multiple widths would produce masked vst.msk
    # stores and partial-lane LN reductions (measured up to ~4x slower).
    assert num_hidden_nodes % 128 == 0, num_hidden_nodes
    assert embed_size % 128 == 0, embed_size

    # Row tile: sublane-aligned (multiple of 8), capped (default 256 -> full-height
    # MXU passes on v6e/v7x; 128+ already fills v5e's 4x128^2 MXU).
    tm = min(_round_up(B, 8), _round_up(tm_cap, 8))
    grid_m = pl.cdiv(B, tm)
    # v7x megacore: keep the number of row tiles even (>1) so both TensorCores
    # get work; the extra tile is just zero padding.
    if grid_m > 1 and grid_m % 2 == 1:
        grid_m += 1
    b_padded = grid_m * tm
    x_in = jnp.pad(x, ((0, b_padded - B), (0, 0))) if b_padded != B else x

    flat_args = [x_in]
    in_specs = [pl.BlockSpec((tm, FEAT_COUNT), lambda i: (i, 0))]
    # Constant index_map => each parameter is fetched once and stays resident.
    # Buffered(1): no double-buffer for never-changing blocks (halves param VMEM).
    param_list = []
    for (w, b, g, bt) in hidden:
        param_list += [w, b, g, bt]
    param_list += [wf, bf]
    for p in param_list:
        flat_args.append(p)
        in_specs.append(
            pl.BlockSpec(p.shape, lambda i: (0, 0), pipeline_mode=pl.Buffered(1)))

    # --- explicit VMEM budget --------------------------------------------------
    x_bytes = x.dtype.itemsize
    params_bytes = sum(int(p.size) * p.dtype.itemsize for p in param_list)  # x1 (Buffered(1))
    in_tile_bytes = 2 * tm * FEAT_COUNT * x_bytes                            # double-buffered
    out_tile_bytes = 2 * tm * out_width * x_bytes                            # double-buffered
    act_width = max(num_hidden_nodes, embed_size, FEAT_COUNT)
    temps_bytes = 6 * tm * act_width * 4                                     # f32 temporaries
    vmem_needed = params_bytes + in_tile_bytes + out_tile_bytes + temps_bytes
    vmem_limit = int(min(max(int(vmem_needed * 1.5), 8 << 20), 48 << 20))    # <= ~48 MiB (v7x-safe)

    # --- cost estimate for XLA scheduling ---------------------------------------
    L = len(hidden)
    flops = 2 * b_padded * (FEAT_COUNT * num_hidden_nodes
                            + max(L - 1, 0) * num_hidden_nodes * num_hidden_nodes
                            + num_hidden_nodes * embed_size)
    cost = pl.CostEstimate(
        flops=int(flops),
        transcendentals=int(b_padded * L),
        bytes_accessed=int(b_padded * FEAT_COUNT * x_bytes
                           + params_bytes
                           + b_padded * out_width * x_bytes),
    )

    out = pl.pallas_call(
        functools.partial(_fused_append_net_kernel, num_hidden_layers=L),
        out_shape=jax.ShapeDtypeStruct((b_padded, out_width), x.dtype),
        grid_spec=pltpu.PrefetchScalarGridSpec(
            num_scalar_prefetch=0,
            grid=(grid_m,),
            in_specs=in_specs,
            out_specs=pl.BlockSpec((tm, out_width), lambda i: (i, 0)),
        ),
        compiler_params=pltpu.CompilerParams(
            # Row tiles are independent -> shard across TensorCores (v7x megacore).
            dimension_semantics=("parallel",),
            vmem_limit_bytes=vmem_limit,
        ),
        cost_estimate=cost,
    )(*flat_args)

    return out[:B] if b_padded != B else out


# ----------------------------------------------------------------------------
# Parameter init (matches PyTorch nn.Linear default: U(-1/sqrt(fan_in), +))
# Weights are stored transposed vs PyTorch, i.e. (in_dim, out_dim).
# ----------------------------------------------------------------------------
def init_append_net_params(key, embed_size, num_hidden_nodes, num_hidden_layers):
    params = {"hidden": [], "final": None}
    last_dim = FEAT_COUNT
    for _ in range(num_hidden_layers):
        key, kw, kb = jax.random.split(key, 3)
        bound = 1.0 / jnp.sqrt(float(last_dim))
        w = jax.random.uniform(kw, (last_dim, num_hidden_nodes), jnp.float32,
                               minval=-bound, maxval=bound)
        b = jax.random.uniform(kb, (1, num_hidden_nodes), jnp.float32,
                               minval=-bound, maxval=bound)
        gamma = jnp.ones((1, num_hidden_nodes), jnp.float32)
        beta = jnp.zeros((1, num_hidden_nodes), jnp.float32)
        params["hidden"].append((w, b, gamma, beta))
        last_dim = num_hidden_nodes

    key, kw, kb = jax.random.split(key, 3)
    bound = 1.0 / jnp.sqrt(float(last_dim))
    wf = jax.random.uniform(kw, (last_dim, embed_size), jnp.float32,
                            minval=-bound, maxval=bound)
    bf = jax.random.uniform(kb, (1, embed_size), jnp.float32,
                            minval=-bound, maxval=bound)
    params["final"] = (wf, bf)
    return params


# ----------------------------------------------------------------------------
# Pure-JAX reference (f32) for correctness checking
# ----------------------------------------------------------------------------
def append_net_reference(params, x):
    h = x
    for (w, b, gamma, beta) in params["hidden"]:
        h = jnp.maximum(h @ w.astype(jnp.float32) + b.astype(jnp.float32), 0.0)
        mean = jnp.mean(h, axis=-1, keepdims=True)
        var = jnp.mean((h - mean) ** 2, axis=-1, keepdims=True)
        h = (h - mean) / jnp.sqrt(var + LN_EPS) * gamma + beta
    wf, bf = params["final"]
    emb = h @ wf.astype(jnp.float32) + bf.astype(jnp.float32)
    return jnp.concatenate([x, emb], axis=1)


if __name__ == "__main__":
    B = 13                      # deliberately NOT a tile multiple -> exercises pad+slice path
    EMBED_SIZE = 128            # 768 + 128 = 896 = 7 * 128 -> lane-dense output
    NUM_HIDDEN_NODES = 256
    NUM_HIDDEN_LAYERS = 2
    DROPOUT_RATE = 0.0          # inference-mode identity regardless

    key = jax.random.PRNGKey(0)
    key, kx = jax.random.split(key)
    x = jax.random.normal(kx, (B, FEAT_COUNT), jnp.float32)

    params = init_append_net_params(key, EMBED_SIZE, NUM_HIDDEN_NODES,
                                    NUM_HIDDEN_LAYERS)

    ref = append_net_reference(params, x)

    # Default serving tile (tm_cap=256): single grid step here (B=13 -> tm=16).
    out = jax.block_until_ready(append_net_forward(params, x))
    assert out.shape == (B, FEAT_COUNT + EMBED_SIZE), out.shape
    assert jnp.allclose(out, ref, atol=1e-4, rtol=1e-4), \
        float(jnp.max(jnp.abs(out - ref)))

    # Small tile (tm=8) -> 2 grid steps: exercises pipelining / megacore path.
    out_small = jax.block_until_ready(append_net_forward(params, x, tm_cap=8))
    assert out_small.shape == (B, FEAT_COUNT + EMBED_SIZE), out_small.shape
    assert jnp.allclose(out_small, ref, atol=1e-4, rtol=1e-4), \
        float(jnp.max(jnp.abs(out_small - ref)))

    # bf16-weight fast path (v6e/v7x serving default): same fused kernel,
    # bf16 inter-layer activations, looser tolerance.
    params_bf16 = jax.tree_util.tree_map(lambda p: p.astype(jnp.bfloat16), params)
    out_bf16 = jax.block_until_ready(append_net_forward(params_bf16, x))
    assert out_bf16.shape == (B, FEAT_COUNT + EMBED_SIZE), out_bf16.shape
    assert jnp.allclose(out_bf16, ref, atol=1e-1, rtol=1e-1), \
        float(jnp.max(jnp.abs(out_bf16 - ref)))

    print("KERNEL_OK")
</pallas_src>

<mosaic_0001>
module attributes {stable_mosaic.version = 11 : i64} {
  func.func @_fused_append_net_kernel(%arg0: i32, %arg1: memref<16x768xf32, #tpu.memory_space<vmem>>, %arg2: memref<768x256xf32, #tpu.memory_space<vmem>>, %arg3: memref<1x256xf32, #tpu.memory_space<vmem>>, %arg4: memref<1x256xf32, #tpu.memory_space<vmem>>, %arg5: memref<1x256xf32, #tpu.memory_space<vmem>>, %arg6: memref<256x256xf32, #tpu.memory_space<vmem>>, %arg7: memref<1x256xf32, #tpu.memory_space<vmem>>, %arg8: memref<1x256xf32, #tpu.memory_space<vmem>>, %arg9: memref<1x256xf32, #tpu.memory_space<vmem>>, %arg10: memref<256x128xf32, #tpu.memory_space<vmem>>, %arg11: memref<1x128xf32, #tpu.memory_space<vmem>>, %arg12: memref<16x896xf32, #tpu.memory_space<vmem>>) attributes {dimension_semantics = [#tpu.dimension_semantics<parallel>], iteration_bounds = array<i64: 1>, scalar_prefetch = 0 : i64, scratch_operands = 0 : i64, tpu.core_type = #tpu.core_type<tc>, window_params = [{transform_indices = @transform_0, window_bounds = array<i64: 16, 768>}, {pipeline_mode = #tpu.pipeline_mode<synchronous>, transform_indices = @transform_1, window_bounds = array<i64: 768, 256>}, {pipeline_mode = #tpu.pipeline_mode<synchronous>, transform_indices = @transform_2, window_bounds = array<i64: 1, 256>}, {pipeline_mode = #tpu.pipeline_mode<synchronous>, transform_indices = @transform_3, window_bounds = array<i64: 1, 256>}, {pipeline_mode = #tpu.pipeline_mode<synchronous>, transform_indices = @transform_4, window_bounds = array<i64: 1, 256>}, {pipeline_mode = #tpu.pipeline_mode<synchronous>, transform_indices = @transform_5, window_bounds = array<i64: 256, 256>}, {pipeline_mode = #tpu.pipeline_mode<synchronous>, transform_indices = @transform_6, window_bounds = array<i64: 1, 256>}, {pipeline_mode = #tpu.pipeline_mode<synchronous>, transform_indices = @transform_7, window_bounds = array<i64: 1, 256>}, {pipeline_mode = #tpu.pipeline_mode<synchronous>, transform_indices = @transform_8, window_bounds = array<i64: 1, 256>}, {pipeline_mode = #tpu.pipeline_mode<synchronous>, transform_indices = @transform_9, window_bounds = array<i64: 256, 128>}, {pipeline_mode = #tpu.pipeline_mode<synchronous>, transform_indices = @transform_10, window_bounds = array<i64: 1, 128>}, {transform_indices = @transform_11, window_bounds = array<i64: 16, 896>}]} {
    %c0 = arith.constant 0 : index
    %c0_0 = arith.constant 0 : index
    %0 = vector.load %arg1[%c0, %c0_0] : memref<16x768xf32, #tpu.memory_space<vmem>>, vector<16x768xf32>
    %c0_1 = arith.constant 0 : index
    %c0_2 = arith.constant 0 : index
    %1 = vector.load %arg2[%c0_1, %c0_2] : memref<768x256xf32, #tpu.memory_space<vmem>>, vector<768x256xf32>
    %cst = arith.constant dense<0.000000e+00> : vector<16x256xf32>
    %2 = tpu.matmul %0, %1, %cst {dimension_numbers = #tpu.dot_dimension_numbers<[1], [0], [0], [1], [0, 0, 1, 1], [], []>} : vector<16x768xf32>, vector<768x256xf32>, vector<16x256xf32> -> vector<16x256xf32>
    %c0_3 = arith.constant 0 : index
    %c0_4 = arith.constant 0 : index
    %3 = vector.load %arg3[%c0_3, %c0_4] : memref<1x256xf32, #tpu.memory_space<vmem>>, vector<1x256xf32>
    %4 = vector.broadcast %3 : vector<1x256xf32> to vector<16x256xf32>
    %5 = arith.addf %2, %4 : vector<16x256xf32>
    %cst_5 = arith.constant 0.000000e+00 : f32
    %6 = vector.broadcast %cst_5 : f32 to vector<16x256xf32>
    %7 = arith.maximumf %5, %6 : vector<16x256xf32>
    %cst_6 = arith.constant dense<0.000000e+00> : vector<16xf32>
    %8 = vector.multi_reduction <add>, %7, %cst_6 [1] : vector<16x256xf32> to vector<16xf32>
    %9 = vector.shape_cast %8 : vector<16xf32> to vector<16x1xf32>
    %cst_7 = arith.constant 2.560000e+02 : f32
    %10 = vector.broadcast %cst_7 : f32 to vector<16x1xf32>
    %11 = arith.divf %9, %10 : vector<16x1xf32>
    %12 = arith.mulf %7, %7 : vector<16x256xf32>
    %cst_8 = arith.constant dense<0.000000e+00> : vector<16xf32>
    %13 = vector.multi_reduction <add>, %12, %cst_8 [1] : vector<16x256xf32> to vector<16xf32>
    %14 = vector.shape_cast %13 : vector<16xf32> to vector<16x1xf32>
    %cst_9 = arith.constant 2.560000e+02 : f32
    %15 = vector.broadcast %cst_9 : f32 to vector<16x1xf32>
    %16 = arith.divf %14, %15 : vector<16x1xf32>
    %17 = arith.mulf %11, %11 : vector<16x1xf32>
    %18 = arith.subf %16, %17 : vector<16x1xf32>
    %cst_10 = arith.constant 0.000000e+00 : f32
    %19 = vector.broadcast %cst_10 : f32 to vector<16x1xf32>
    %20 = arith.maximumf %18, %19 : vector<16x1xf32>
    %cst_11 = arith.constant 9.99999974E-6 : f32
    %21 = vector.broadcast %cst_11 : f32 to vector<16x1xf32>
    %22 = arith.addf %20, %21 : vector<16x1xf32>
    %23 = math.rsqrt %22 : vector<16x1xf32>
    %24 = vector.broadcast %11 : vector<16x1xf32> to vector<16x256xf32>
    %25 = arith.subf %7, %24 : vector<16x256xf32>
    %26 = vector.broadcast %23 : vector<16x1xf32> to vector<16x256xf32>
    %27 = arith.mulf %25, %26 : vector<16x256xf32>
    %c0_12 = arith.constant 0 : index
    %c0_13 = arith.constant 0 : index
    %28 = vector.load %arg4[%c0_12, %c0_13] : memref<1x256xf32, #tpu.memory_space<vmem>>, vector<1x256xf32>
    %29 = vector.broadcast %28 : vector<1x256xf32> to vector<16x256xf32>
    %30 = arith.mulf %27, %29 : vector<16x256xf32>
    %c0_14 = arith.constant 0 : index
    %c0_15 = arith.constant 0 : index
    %31 = vector.load %arg5[%c0_14, %c0_15] : memref<1x256xf32, #tpu.memory_space<vmem>>, vector<1x256xf32>
    %32 = vector.broadcast %31 : vector<1x256xf32> to vector<16x256xf32>
    %33 = arith.addf %30, %32 : vector<16x256xf32>
    %c0_16 = arith.constant 0 : index
    %c0_17 = arith.constant 0 : index
    %34 = vector.load %arg6[%c0_16, %c0_17] : memref<256x256xf32, #tpu.memory_space<vmem>>, vector<256x256xf32>
    %cst_18 = arith.constant dense<0.000000e+00> : vector<16x256xf32>
    %35 = tpu.matmul %33, %34, %cst_18 {dimension_numbers = #tpu.dot_dimension_numbers<[1], [0], [0], [1], [0, 0, 1, 1], [], []>} : vector<16x256xf32>, vector<256x256xf32>, vector<16x256xf32> -> vector<16x256xf32>
    %c0_19 = arith.constant 0 : index
    %c0_20 = arith.constant 0 : index
    %36 = vector.load %arg7[%c0_19, %c0_20] : memref<1x256xf32, #tpu.memory_space<vmem>>, vector<1x256xf32>
    %37 = vector.broadcast %36 : vector<1x256xf32> to vector<16x256xf32>
    %38 = arith.addf %35, %37 : vector<16x256xf32>
    %cst_21 = arith.constant 0.000000e+00 : f32
    %39 = vector.broadcast %cst_21 : f32 to vector<16x256xf32>
    %40 = arith.maximumf %38, %39 : vector<16x256xf32>
    %cst_22 = arith.constant dense<0.000000e+00> : vector<16xf32>
    %41 = vector.multi_reduction <add>, %40, %cst_22 [1] : vector<16x256xf32> to vector<16xf32>
    %42 = vector.shape_cast %41 : vector<16xf32> to vector<16x1xf32>
    %cst_23 = arith.constant 2.560000e+02 : f32
    %43 = vector.broadcast %cst_23 : f32 to vector<16x1xf32>
    %44 = arith.divf %42, %43 : vector<16x1xf32>
    %45 = arith.mulf %40, %40 : vector<16x256xf32>
    %cst_24 = arith.constant dense<0.000000e+00> : vector<16xf32>
    %46 = vector.multi_reduction <add>, %45, %cst_24 [1] : vector<16x256xf32> to vector<16xf32>
    %47 = vector.shape_cast %46 : vector<16xf32> to vector<16x1xf32>
    %cst_25 = arith.constant 2.560000e+02 : f32
    %48 = vector.broadcast %cst_25 : f32 to vector<16x1xf32>
    %49 = arith.divf %47, %48 : vector<16x1xf32>
    %50 = arith.mulf %44, %44 : vector<16x1xf32>
    %51 = arith.subf %49, %50 : vector<16x1xf32>
    %cst_26 = arith.constant 0.000000e+00 : f32
    %52 = vector.broadcast %cst_26 : f32 to vector<16x1xf32>
    %53 = arith.maximumf %51, %52 : vector<16x1xf32>
    %cst_27 = arith.constant 9.99999974E-6 : f32
    %54 = vector.broadcast %cst_27 : f32 to vector<16x1xf32>
    %55 = arith.addf %53, %54 : vector<16x1xf32>
    %56 = math.rsqrt %55 : vector<16x1xf32>
    %57 = vector.broadcast %44 : vector<16x1xf32> to vector<16x256xf32>
    %58 = arith.subf %40, %57 : vector<16x256xf32>
    %59 = vector.broadcast %56 : vector<16x1xf32> to vector<16x256xf32>
    %60 = arith.mulf %58, %59 : vector<16x256xf32>
    %c0_28 = arith.constant 0 : index
    %c0_29 = arith.constant 0 : index
    %61 = vector.load %arg8[%c0_28, %c0_29] : memref<1x256xf32, #tpu.memory_space<vmem>>, vector<1x256xf32>
    %62 = vector.broadcast %61 : vector<1x256xf32> to vector<16x256xf32>
    %63 = arith.mulf %60, %62 : vector<16x256xf32>
    %c0_30 = arith.constant 0 : index
    %c0_31 = arith.constant 0 : index
    %64 = vector.load %arg9[%c0_30, %c0_31] : memref<1x256xf32, #tpu.memory_space<vmem>>, vector<1x256xf32>
    %65 = vector.broadcast %64 : vector<1x256xf32> to vector<16x256xf32>
    %66 = arith.addf %63, %65 : vector<16x256xf32>
    %c0_32 = arith.constant 0 : index
    %c0_33 = arith.constant 0 : index
    %67 = vector.load %arg10[%c0_32, %c0_33] : memref<256x128xf32, #tpu.memory_space<vmem>>, vector<256x128xf32>
    %cst_34 = arith.constant dense<0.000000e+00> : vector<16x128xf32>
    %68 = tpu.matmul %66, %67, %cst_34 {dimension_numbers = #tpu.dot_dimension_numbers<[1], [0], [0], [1], [0, 0, 1, 1], [], []>} : vector<16x256xf32>, vector<256x128xf32>, vector<16x128xf32> -> vector<16x128xf32>
    %c0_35 = arith.constant 0 : index
    %c0_36 = arith.constant 0 : index
    %69 = vector.load %arg11[%c0_35, %c0_36] : memref<1x128xf32, #tpu.memory_space<vmem>>, vector<1x128xf32>
    %70 = vector.broadcast %69 : vector<1x128xf32> to vector<16x128xf32>
    %71 = arith.addf %68, %70 : vector<16x128xf32>
    %c0_37 = arith.constant 0 : index
    %c0_38 = arith.constant 0 : index
    %72 = vector.load %arg12[%c0_37, %c0_38] : memref<16x896xf32, #tpu.memory_space<vmem>>, vector<16x768xf32>
    tpu.vector_store %arg12[%c0_37, %c0_38], %0 {strides = array<i32>} : memref<16x896xf32, #tpu.memory_space<vmem>>, vector<16x768xf32>,
    %c0_39 = arith.constant 0 : index
    %c768 = arith.constant 768 : index
    %73 = vector.load %arg12[%c0_39, %c768] : memref<16x896xf32, #tpu.memory_space<vmem>>, vector<16x128xf32>
    tpu.vector_store %arg12[%c0_39, %c768], %71 {strides = array<i32>} : memref<16x896xf32, #tpu.memory_space<vmem>>, vector<16x128xf32>,
    return
  }
  func.func @transform_0(%arg0: i32) -> (i32, i32) {
    %c0_i32 = arith.constant 0 : i32
    %c0_i32_0 = arith.constant 0 : i32
    return %arg0, %c0_i32 : i32, i32
  }
  func.func @transform_1(%arg0: i32) -> (i32, i32) {
    %c0_i32 = arith.constant 0 : i32
    %c0_i32_0 = arith.constant 0 : i32
    %c0_i32_1 = arith.constant 0 : i32
    return %c0_i32, %c0_i32_0 : i32, i32
  }
  func.func @transform_2(%arg0: i32) -> (i32, i32) {
    %c0_i32 = arith.constant 0 : i32
    %c0_i32_0 = arith.constant 0 : i32
    %c0_i32_1 = arith.constant 0 : i32
    return %c0_i32, %c0_i32_0 : i32, i32
  }
  func.func @transform_3(%arg0: i32) -> (i32, i32) {
    %c0_i32 = arith.constant 0 : i32
    %c0_i32_0 = arith.constant 0 : i32
    %c0_i32_1 = arith.constant 0 : i32
    return %c0_i32, %c0_i32_0 : i32, i32
  }
  func.func @transform_4(%arg0: i32) -> (i32, i32) {
    %c0_i32 = arith.constant 0 : i32
    %c0_i32_0 = arith.constant 0 : i32
    %c0_i32_1 = arith.constant 0 : i32
    return %c0_i32, %c0_i32_0 : i32, i32
  }
  func.func @transform_5(%arg0: i32) -> (i32, i32) {
    %c0_i32 = arith.constant 0 : i32
    %c0_i32_0 = arith.constant 0 : i32
    %c0_i32_1 = arith.constant 0 : i32
    return %c0_i32, %c0_i32_0 : i32, i32
  }
  func.func @transform_6(%arg0: i32) -> (i32, i32) {
    %c0_i32 = arith.constant 0 : i32
    %c0_i32_0 = arith.constant 0 : i32
    %c0_i32_1 = arith.constant 0 : i32
    return %c0_i32, %c0_i32_0 : i32, i32
  }
  func.func @transform_7(%arg0: i32) -> (i32, i32) {
    %c0_i32 = arith.constant 0 : i32
    %c0_i32_0 = arith.constant 0 : i32
    %c0_i32_1 = arith.constant 0 : i32
    return %c0_i32, %c0_i32_0 : i32, i32
  }
  func.func @transform_8(%arg0: i32) -> (i32, i32) {
    %c0_i32 = arith.constant 0 : i32
    %c0_i32_0 = arith.constant 0 : i32
    %c0_i32_1 = arith.constant 0 : i32
    return %c0_i32, %c0_i32_0 : i32, i32
  }
  func.func @transform_9(%arg0: i32) -> (i32, i32) {
    %c0_i32 = arith.constant 0 : i32
    %c0_i32_0 = arith.constant 0 : i32
    %c0_i32_1 = arith.constant 0 : i32
    return %c0_i32, %c0_i32_0 : i32, i32
  }
  func.func @transform_10(%arg0: i32) -> (i32, i32) {
    %c0_i32 = arith.constant 0 : i32
    %c0_i32_0 = arith.constant 0 : i32
    %c0_i32_1 = arith.constant 0 : i32
    return %c0_i32, %c0_i32_0 : i32, i32
  }
  func.func @transform_11(%arg0: i32) -> (i32, i32) {
    %c0_i32 = arith.constant 0 : i32
    %c0_i32_0 = arith.constant 0 : i32
    return %arg0, %c0_i32 : i32, i32
  }
}

</mosaic_0001>

<llo_original>
// kernel: append_net_forward.1
$region0: #{append_net_forward.1}
  #allocation0 [shape = 'u32[]', space=smem, size = 0x4, offset = 0x4, fixed_abs, tag = 'smem constant byte address 0x4 - core index']
  #allocation1 [shape = 'u32[144,128]{1,0:T(1,128)}', space=vmem, size = 0x12000, scoped, tag = 'internal scratch']
  %s0 = inlined_call_operand.vmem [shape: f32[16,768], index: 0, kind: input, shape index: {}]
  %s1 = inlined_call_operand.hbm [shape: f32[768,256], index: 1, kind: input, shape index: {}]
  %s2 = inlined_call_operand.vmem [shape: f32[1,256], index: 2, kind: input, shape index: {}]
  %s3 = inlined_call_operand.vmem [shape: f32[1,256], index: 3, kind: input, shape index: {}]
  %s4 = inlined_call_operand.vmem [shape: f32[1,256], index: 4, kind: input, shape index: {}]
  %s5 = inlined_call_operand.hbm [shape: f32[256,256], index: 5, kind: input, shape index: {}]
  %s6 = inlined_call_operand.vmem [shape: f32[1,256], index: 6, kind: input, shape index: {}]
  %s7 = inlined_call_operand.vmem [shape: f32[1,256], index: 7, kind: input, shape index: {}]
  %s8 = inlined_call_operand.vmem [shape: f32[1,256], index: 8, kind: input, shape index: {}]
  %s9 = inlined_call_operand.hbm [shape: f32[256,128], index: 9, kind: input, shape index: {}]
  %s10 = inlined_call_operand.vmem [shape: f32[1,128], index: 10, kind: input, shape index: {}]
  %s11 = inlined_call_operand.hbm [shape: f32[16,896], index: 11, kind: output, shape index: {}]
  %s12 = sld [smem:[#allocation0]]
  $region66: #{append_net_forward.1} parent=0
    _
  %s14 = ssub.s32 1, %s12
  %s15 = scalar_select 0, %s14, %s12
  $region1: #{append_net_forward.1} parent=0
    #allocation2 [shape = 'u8[786432]{0}', space=vmem, size = 0xc0000, scoped, tag = 'input window, operand 1, single buffered']
    #allocation3 [shape = 's32[1]{0}', space=sflag, size = 0x4, scoped, tag = 'scoped memory for append_net_forward.1']
    #allocation4 [shape = 's32[1]{0}', space=sflag, size = 0x4, scoped, tag = 'scoped memory for append_net_forward.1']
    #allocation5 [shape = 'u8[262144]{0}', space=vmem, size = 0x40000, scoped, tag = 'input window, operand 5, single buffered']
    #allocation6 [shape = 's32[1]{0}', space=sflag, size = 0x4, scoped, tag = 'scoped memory for append_net_forward.1']
    #allocation7 [shape = 'u8[131072]{0}', space=vmem, size = 0x20000, scoped, tag = 'input window, operand 9, single buffered']
    #allocation8 [shape = 'u8[57344]{0}', space=vmem, size = 0xe000, scoped, tag = 'output window, operand 0, single buffered']
    %16 = vsyncpa [#allocation3], 0
    %17 = vsyncpa [#allocation6], 0
    %18 = vsyncpa [#allocation4], 0
    // Predicated region
    $region2: #{append_net_forward.1} parent=1 // pred_check
      _
    $region3: #{append_net_forward.1} parent=1 // pred_check_branch
      %20 = sbr.rel (0) target = $region5
    $region4: #{append_net_forward.1} parent=1 // pred_region
      _
    $region5: #{append_net_forward.1} parent=1 // pred_fallthru
      _
    // Predicated region
    $region6: #{append_net_forward.1} parent=1 // pred_check
      _
    $region7: #{append_net_forward.1} parent=1 // pred_check_branch
      %22 = sbr.rel (0) target = $region9
    $region8: #{append_net_forward.1} parent=1 // pred_region
      %s24 = ssub.s32 24576, 24576
      %25 = vsyncadd [#allocation3], %s24
      %s26 = sshll.u32 [#allocation2], 4
      %s27 = int_to_ptr.vmem [resolvable:$true] %s26
      %32 = dma.hbm_to_vmem [thread:$0]  %s1, 24576, %s27, [#allocation3], 256, 256, 16
    $region9: #{append_net_forward.1} parent=1 // pred_fallthru
      _
    // Predicated region
    $region10: #{append_net_forward.1} parent=1 // pred_check
      _
    $region11: #{append_net_forward.1} parent=1 // pred_check_branch
      %34 = sbr.rel (0) target = $region13
    $region12: #{append_net_forward.1} parent=1 // pred_region
      _
    $region13: #{append_net_forward.1} parent=1 // pred_fallthru
      _
    // Predicated region
    $region14: #{append_net_forward.1} parent=1 // pred_check
      _
    $region15: #{append_net_forward.1} parent=1 // pred_check_branch
      %36 = sbr.rel (0) target = $region17
    $region16: #{append_net_forward.1} parent=1 // pred_region
      _
    $region17: #{append_net_forward.1} parent=1 // pred_fallthru
      _
    // Predicated region
    $region18: #{append_net_forward.1} parent=1 // pred_check
      _
    $region19: #{append_net_forward.1} parent=1 // pred_check_branch
      %38 = sbr.rel (0) target = $region21
    $region20: #{append_net_forward.1} parent=1 // pred_region
      _
    $region21: #{append_net_forward.1} parent=1 // pred_fallthru
      _
    // Predicated region
    $region22: #{append_net_forward.1} parent=1 // pred_check
      _
    $region23: #{append_net_forward.1} parent=1 // pred_check_branch
      %40 = sbr.rel (0) target = $region25
    $region24: #{append_net_forward.1} parent=1 // pred_region
      %s42 = ssub.s32 8192, 8192
      %43 = vsyncadd [#allocation6], %s42
      %s44 = sshll.u32 [#allocation5], 4
      %s45 = int_to_ptr.vmem [resolvable:$true] %s44
      %50 = dma.hbm_to_vmem [thread:$0]  %s5, 8192, %s45, [#allocation6], 256, 256, 16
    $region25: #{append_net_forward.1} parent=1 // pred_fallthru
      _
    // Predicated region
    $region26: #{append_net_forward.1} parent=1 // pred_check
      _
    $region27: #{append_net_forward.1} parent=1 // pred_check_branch
      %52 = sbr.rel (0) target = $region29
    $region28: #{append_net_forward.1} parent=1 // pred_region
      _
    $region29: #{append_net_forward.1} parent=1 // pred_fallthru
      _
    // Predicated region
    $region30: #{append_net_forward.1} parent=1 // pred_check
      _
    $region31: #{append_net_forward.1} parent=1 // pred_check_branch
      %54 = sbr.rel (0) target = $region33
    $region32: #{append_net_forward.1} parent=1 // pred_region
      _
    $region33: #{append_net_forward.1} parent=1 // pred_fallthru
      _
    // Predicated region
    $region34: #{append_net_forward.1} parent=1 // pred_check
      _
    $region35: #{append_net_forward.1} parent=1 // pred_check_branch
      %56 = sbr.rel (0) target = $region37
    $region36: #{append_net_forward.1} parent=1 // pred_region
      _
    $region37: #{append_net_forward.1} parent=1 // pred_fallthru
      _
    // Predicated region
    $region38: #{append_net_forward.1} parent=1 // pred_check
      _
    $region39: #{append_net_forward.1} parent=1 // pred_check_branch
      %58 = sbr.rel (0) target = $region41
    $region40: #{append_net_forward.1} parent=1 // pred_region
      %s60 = ssub.s32 4096, 4096
      %61 = vsyncadd [#allocation6], %s60
      %s62 = sshll.u32 [#allocation7], 4
      %s63 = int_to_ptr.vmem [resolvable:$true] %s62
      %68 = dma.hbm_to_vmem [thread:$0]  %s9, 4096, %s63, [#allocation6], 128, 128, 8
    $region41: #{append_net_forward.1} parent=1 // pred_fallthru
      _
    // Predicated region
    $region42: #{append_net_forward.1} parent=1 // pred_check
      _
    $region43: #{append_net_forward.1} parent=1 // pred_check_branch
      %70 = sbr.rel (0) target = $region45
    $region44: #{append_net_forward.1} parent=1 // pred_region
      _
    $region45: #{append_net_forward.1} parent=1 // pred_fallthru
      _
    // Predicated region
    $region46: #{append_net_forward.1} parent=1 // pred_check
      _
    $region47: #{append_net_forward.1} parent=1 // pred_check_branch
      %72 = sbr.rel (0) target = $region49
    $region48: #{append_net_forward.1} parent=1 // pred_region
      %73 = dma.done [#allocation3], 24576
    $region49: #{append_net_forward.1} parent=1 // pred_fallthru
      _
    // Predicated region
    $region50: #{append_net_forward.1} parent=1 // pred_check
      _
    $region51: #{append_net_forward.1} parent=1 // pred_check_branch
      %75 = sbr.rel (0) target = $region53
    $region52: #{append_net_forward.1} parent=1 // pred_region
      %76 = dma.done [#allocation6], 8192
    $region53: #{append_net_forward.1} parent=1 // pred_fallthru
      _
    // Predicated region
    $region54: #{append_net_forward.1} parent=1 // pred_check
      _
    $region55: #{append_net_forward.1} parent=1 // pred_check_branch
      %78 = sbr.rel (0) target = $region57
    $region56: #{append_net_forward.1} parent=1 // pred_region
      %79 = dma.done [#allocation6], 4096
    $region57: #{append_net_forward.1} parent=1 // pred_fallthru
      _
    %v80 = vld [vmem:[%s0] sm:$0xff]
    %v81 = vld [vmem:[%s0 + $0x8] sm:$0xff]
    %v82 = vld [vmem:[%s0 + $0x10] sm:$0xff]
    %v83 = vld [vmem:[%s0 + $0x18] sm:$0xff]
    %v84 = vld [vmem:[%s0 + $0x20] sm:$0xff]
    %v85 = vld [vmem:[%s0 + $0x28] sm:$0xff]
    %v86 = vld [vmem:[%s0 + $0x30] sm:$0xff]
    %v87 = vld [vmem:[%s0 + $0x38] sm:$0xff]
    %v88 = vld [vmem:[%s0 + $0x40] sm:$0xff]
    %v89 = vld [vmem:[%s0 + $0x48] sm:$0xff]
    %v90 = vld [vmem:[%s0 + $0x50] sm:$0xff]
    %v91 = vld [vmem:[%s0 + $0x58] sm:$0xff]
    %v92 = vld [vmem:[#allocation2] sm:$0xff]
    %v93 = vld [vmem:[#allocation2 + $0x8] sm:$0xff]
    %v94 = vld [vmem:[#allocation2 + $0x10] sm:$0xff]
    %v95 = vld [vmem:[#allocation2 + $0x18] sm:$0xff]
    %v96 = vld [vmem:[#allocation2 + $0x20] sm:$0xff]
    %v97 = vld [vmem:[#allocation2 + $0x28] sm:$0xff]
    %v98 = vld [vmem:[#allocation2 + $0x30] sm:$0xff]
    %v99 = vld [vmem:[#allocation2 + $0x38] sm:$0xff]
    %v100 = vld [vmem:[#allocation2 + $0x40] sm:$0xff]
    %v101 = vld [vmem:[#allocation2 + $0x48] sm:$0xff]
    %v102 = vld [vmem:[#allocation2 + $0x50] sm:$0xff]
    %v103 = vld [vmem:[#allocation2 + $0x58] sm:$0xff]
    %v104 = vld [vmem:[#allocation2 + $0x60] sm:$0xff]
    %v105 = vld [vmem:[#allocation2 + $0x68] sm:$0xff]
    %v106 = vld [vmem:[#allocation2 + $0x70] sm:$0xff]
    %v107 = vld [vmem:[#allocation2 + $0x78] sm:$0xff]
    %v108 = vld [vmem:[#allocation2 + $0x80] sm:$0xff]
    %v109 = vld [vmem:[#allocation2 + $0x88] sm:$0xff]
    %v110 = vld [vmem:[#allocation2 + $0x90] sm:$0xff]
    %v111 = vld [vmem:[#allocation2 + $0x98] sm:$0xff]
    %v112 = vld [vmem:[#allocation2 + $0xa0] sm:$0xff]
    %v113 = vld [vmem:[#allocation2 + $0xa8] sm:$0xff]
    %v114 = vld [vmem:[#allocation2 + $0xb0] sm:$0xff]
    %v115 = vld [vmem:[#allocation2 + $0xb8] sm:$0xff]
    %v116 = vld [vmem:[#allocation2 + $0xc0] sm:$0xff]
    %v117 = vld [vmem:[#allocation2 + $0xc8] sm:$0xff]
    %v118 = vld [vmem:[#allocation2 + $0xd0] sm:$0xff]
    %v119 = vld [vmem:[#allocation2 + $0xd8] sm:$0xff]
    %v120 = vld [vmem:[#allocation2 + $0xe0] sm:$0xff]
    %v121 = vld [vmem:[#allocation2 + $0xe8] sm:$0xff]
    %v122 = vld [vmem:[#allocation2 + $0xf0] sm:$0xff]
    %v123 = vld [vmem:[#allocation2 + $0xf8] sm:$0xff]
    %v124 = vld [vmem:[#allocation2 + $0x100] sm:$0xff]
    %v125 = vld [vmem:[#allocation2 + $0x108] sm:$0xff]
    %v126 = vld [vmem:[#allocation2 + $0x110] sm:$0xff]
    %v127 = vld [vmem:[#allocation2 + $0x118] sm:$0xff]
    %v128 = vld [vmem:[#allocation2 + $0x120] sm:$0xff]
    %v129 = vld [vmem:[#allocation2 + $0x128] sm:$0xff]
    %v130 = vld [vmem:[#allocation2 + $0x130] sm:$0xff]
    %v131 = vld [vmem:[#allocation2 + $0x138] sm:$0xff]
    %v132 = vld [vmem:[#allocation2 + $0x140] sm:$0xff]
    %v133 = vld [vmem:[#allocation2 + $0x148] sm:$0xff]
    %v134 = vld [vmem:[#allocation2 + $0x150] sm:$0xff]
    %v135 = vld [vmem:[#allocation2 + $0x158] sm:$0xff]
    %v136 = vld [vmem:[#allocation2 + $0x160] sm:$0xff]
    %v137 = vld [vmem:[#allocation2 + $0x168] sm:$0xff]
    %v138 = vld [vmem:[#allocation2 + $0x170] sm:$0xff]
    %v139 = vld [vmem:[#allocation2 + $0x178] sm:$0xff]
    %v140 = vld [vmem:[#allocation2 + $0x180] sm:$0xff]
    %v141 = vld [vmem:[#allocation2 + $0x188] sm:$0xff]
    %v142 = vld [vmem:[#allocation2 + $0x190] sm:$0xff]
    %v143 = vld [vmem:[#allocation2 + $0x198] sm:$0xff]
    %v144 = vld [vmem:[#allocation2 + $0x1a0] sm:$0xff]
    %v145 = vld [vmem:[#allocation2 + $0x1a8] sm:$0xff]
    %v146 = vld [vmem:[#allocation2 + $0x1b0] sm:$0xff]
    %v147 = vld [vmem:[#allocation2 + $0x1b8] sm:$0xff]
    %v148 = vld [vmem:[#allocation2 + $0x1c0] sm:$0xff]
    %v149 = vld [vmem:[#allocation2 + $0x1c8] sm:$0xff]
    %v150 = vld [vmem:[#allocation2 + $0x1d0] sm:$0xff]
    %v151 = vld [vmem:[#allocation2 + $0x1d8] sm:$0xff]
    %v152 = vld [vmem:[#allocation2 + $0x1e0] sm:$0xff]
    %v153 = vld [vmem:[#allocation2 + $0x1e8] sm:$0xff]
    %v154 = vld [vmem:[#allocation2 + $0x1f0] sm:$0xff]
    %v155 = vld [vmem:[#allocation2 + $0x1f8] sm:$0xff]
    %v156 = vld [vmem:[#allocation2 + $0x200] sm:$0xff]
    %v157 = vld [vmem:[#allocation2 + $0x208] sm:$0xff]
    %v158 = vld [vmem:[#allocation2 + $0x210] sm:$0xff]
    %v159 = vld [vmem:[#allocation2 + $0x218] sm:$0xff]
    %v160 = vld [vmem:[#allocation2 + $0x220] sm:$0xff]
    %v161 = vld [vmem:[#allocation2 + $0x228] sm:$0xff]
    %v162 = vld [vmem:[#allocation2 + $0x230] sm:$0xff]
    %v163 = vld [vmem:[#allocation2 + $0x238] sm:$0xff]
    %v164 = vld [vmem:[#allocation2 + $0x240] sm:$0xff]
    %v165 = vld [vmem:[#allocation2 + $0x248] sm:$0xff]
    %v166 = vld [vmem:[#allocation2 + $0x250] sm:$0xff]
    %v167 = vld [vmem:[#allocation2 + $0x258] sm:$0xff]
    %v168 = vld [vmem:[#allocation2 + $0x260] sm:$0xff]
    %v169 = vld [vmem:[#allocation2 + $0x268] sm:$0xff]
    %v170 = vld [vmem:[#allocation2 + $0x270] sm:$0xff]
    %v171 = vld [vmem:[#allocation2 + $0x278] sm:$0xff]
    %v172 = vld [vmem:[#allocation2 + $0x280] sm:$0xff]
    %v173 = vld [vmem:[#allocation2 + $0x288] sm:$0xff]
    %v174 = vld [vmem:[#allocation2 + $0x290] sm:$0xff]
    %v175 = vld [vmem:[#allocation2 + $0x298] sm:$0xff]
    %v176 = vld [vmem:[#allocation2 + $0x2a0] sm:$0xff]
    %v177 = vld [vmem:[#allocation2 + $0x2a8] sm:$0xff]
    %v178 = vld [vmem:[#allocation2 + $0x2b0] sm:$0xff]
    %v179 = vld [vmem:[#allocation2 + $0x2b8] sm:$0xff]
    %v180 = vld [vmem:[#allocation2 + $0x2c0] sm:$0xff]
    %v181 = vld [vmem:[#allocation2 + $0x2c8] sm:$0xff]
    %v182 = vld [vmem:[#allocation2 + $0x2d0] sm:$0xff]
    %v183 = vld [vmem:[#allocation2 + $0x2d8] sm:$0xff]
    %v184 = vld [vmem:[#allocation2 + $0x2e0] sm:$0xff]
    %v185 = vld [vmem:[#allocation2 + $0x2e8] sm:$0xff]
    %v186 = vld [vmem:[#allocation2 + $0x2f0] sm:$0xff]
    %v187 = vld [vmem:[#allocation2 + $0x2f8] sm:$0xff]
    %v188 = vld [vmem:[#allocation2 + $0x300] sm:$0xff]
    %v189 = vld [vmem:[#allocation2 + $0x308] sm:$0xff]
    %v190 = vld [vmem:[#allocation2 + $0x310] sm:$0xff]
    %v191 = vld [vmem:[#allocation2 + $0x318] sm:$0xff]
    %v192 = vld [vmem:[#allocation2 + $0x320] sm:$0xff]
    %v193 = vld [vmem:[#allocation2 + $0x328] sm:$0xff]
    %v194 = vld [vmem:[#allocation2 + $0x330] sm:$0xff]
    %v195 = vld [vmem:[#allocation2 + $0x338] sm:$0xff]
    %v196 = vld [vmem:[#allocation2 + $0x340] sm:$0xff]
    %v197 = vld [vmem:[#allocation2 + $0x348] sm:$0xff]
    %v198 = vld [vmem:[#allocation2 + $0x350] sm:$0xff]
    %v199 = vld [vmem:[#allocation2 + $0x358] sm:$0xff]
    %v200 = vld [vmem:[#allocation2 + $0x360] sm:$0xff]
    %v201 = vld [vmem:[#allocation2 + $0x368] sm:$0xff]
    %v202 = vld [vmem:[#allocation2 + $0x370] sm:$0xff]
    %v203 = vld [vmem:[#allocation2 + $0x378] sm:$0xff]
    %v204 = vld [vmem:[#allocation2 + $0x380] sm:$0xff]
    %v205 = vld [vmem:[#allocation2 + $0x388] sm:$0xff]
    %v206 = vld [vmem:[#allocation2 + $0x390] sm:$0xff]
    %v207 = vld [vmem:[#allocation2 + $0x398] sm:$0xff]
    %v208 = vld [vmem:[#allocation2 + $0x3a0] sm:$0xff]
    %v209 = vld [vmem:[#allocation2 + $0x3a8] sm:$0xff]
    %v210 = vld [vmem:[#allocation2 + $0x3b0] sm:$0xff]
    %v211 = vld [vmem:[#allocation2 + $0x3b8] sm:$0xff]
    %v212 = vld [vmem:[#allocation2 + $0x3c0] sm:$0xff]
    %v213 = vld [vmem:[#allocation2 + $0x3c8] sm:$0xff]
    %v214 = vld [vmem:[#allocation2 + $0x3d0] sm:$0xff]
    %v215 = vld [vmem:[#allocation2 + $0x3d8] sm:$0xff]
    %v216 = vld [vmem:[#allocation2 + $0x3e0] sm:$0xff]
    %v217 = vld [vmem:[#allocation2 + $0x3e8] sm:$0xff]
    %v218 = vld [vmem:[#allocation2 + $0x3f0] sm:$0xff]
    %v219 = vld [vmem:[#allocation2 + $0x3f8] sm:$0xff]
    %v220 = vld [vmem:[#allocation2 + $0x400] sm:$0xff]
    %v221 = vld [vmem:[#allocation2 + $0x408] sm:$0xff]
    %v222 = vld [vmem:[#allocation2 + $0x410] sm:$0xff]
    %v223 = vld [vmem:[#allocation2 + $0x418] sm:$0xff]
    %v224 = vld [vmem:[#allocation2 + $0x420] sm:$0xff]
    %v225 = vld [vmem:[#allocation2 + $0x428] sm:$0xff]
    %v226 = vld [vmem:[#allocation2 + $0x430] sm:$0xff]
    %v227 = vld [vmem:[#allocation2 + $0x438] sm:$0xff]
    %v228 = vld [vmem:[#allocation2 + $0x440] sm:$0xff]
    %v229 = vld [vmem:[#allocation2 + $0x448] sm:$0xff]
    %v230 = vld [vmem:[#allocation2 + $0x450] sm:$0xff]
    %v231 = vld [vmem:[#allocation2 + $0x458] sm:$0xff]
    %v232 = vld [vmem:[#allocation2 + $0x460] sm:$0xff]
    %v233 = vld [vmem:[#allocation2 + $0x468] sm:$0xff]
    %v234 = vld [vmem:[#allocation2 + $0x470] sm:$0xff]
    %v235 = vld [vmem:[#allocation2 + $0x478] sm:$0xff]
    %v236 = vld [vmem:[#allocation2 + $0x480] sm:$0xff]
    %v237 = vld [vmem:[#allocation2 + $0x488] sm:$0xff]
    %v238 = vld [vmem:[#allocation2 + $0x490] sm:$0xff]
    %v239 = vld [vmem:[#allocation2 + $0x498] sm:$0xff]
    %v240 = vld [vmem:[#allocation2 + $0x4a0] sm:$0xff]
    %v241 = vld [vmem:[#allocation2 + $0x4a8] sm:$0xff]
    %v242 = vld [vmem:[#allocation2 + $0x4b0] sm:$0xff]
    %v243 = vld [vmem:[#allocation2 + $0x4b8] sm:$0xff]
    %v244 = vld [vmem:[#allocation2 + $0x4c0] sm:$0xff]
    %v245 = vld [vmem:[#allocation2 + $0x4c8] sm:$0xff]
    %v246 = vld [vmem:[#allocation2 + $0x4d0] sm:$0xff]
    %v247 = vld [vmem:[#allocation2 + $0x4d8] sm:$0xff]
    %v248 = vld [vmem:[#allocation2 + $0x4e0] sm:$0xff]
    %v249 = vld [vmem:[#allocation2 + $0x4e8] sm:$0xff]
    %v250 = vld [vmem:[#allocation2 + $0x4f0] sm:$0xff]
    %v251 = vld [vmem:[#allocation2 + $0x4f8] sm:$0xff]
    %v252 = vld [vmem:[#allocation2 + $0x500] sm:$0xff]
    %v253 = vld [vmem:[#allocation2 + $0x508] sm:$0xff]
    %v254 = vld [vmem:[#allocation2 + $0x510] sm:$0xff]
    %v255 = vld [vmem:[#allocation2 + $0x518] sm:$0xff]
    %v256 = vld [vmem:[#allocation2 + $0x520] sm:$0xff]
    %v257 = vld [vmem:[#allocation2 + $0x528] sm:$0xff]
    %v258 = vld [vmem:[#allocation2 + $0x530] sm:$0xff]
    %v259 = vld [vmem:[#allocation2 + $0x538] sm:$0xff]
    %v260 = vld [vmem:[#allocation2 + $0x540] sm:$0xff]
    %v261 = vld [vmem:[#allocation2 + $0x548] sm:$0xff]
    %v262 = vld [vmem:[#allocation2 + $0x550] sm:$0xff]
    %v263 = vld [vmem:[#allocation2 + $0x558] sm:$0xff]
    %v264 = vld [vmem:[#allocation2 + $0x560] sm:$0xff]
    %v265 = vld [vmem:[#allocation2 + $0x568] sm:$0xff]
    %v266 = vld [vmem:[#allocation2 + $0x570] sm:$0xff]
    %v267 = vld [vmem:[#allocation2 + $0x578] sm:$0xff]
    %v268 = vld [vmem:[#allocation2 + $0x580] sm:$0xff]
    %v269 = vld [vmem:[#allocation2 + $0x588] sm:$0xff]
    %v270 = vld [vmem:[#allocation2 + $0x590] sm:$0xff]
    %v271 = vld [vmem:[#allocation2 + $0x598] sm:$0xff]
    %v272 = vld [vmem:[#allocation2 + $0x5a0] sm:$0xff]
    %v273 = vld [vmem:[#allocation2 + $0x5a8] sm:$0xff]
    %v274 = vld [vmem:[#allocation2 + $0x5b0] sm:$0xff]
    %v275 = vld [vmem:[#allocation2 + $0x5b8] sm:$0xff]
    %v276 = vld [vmem:[#allocation2 + $0x5c0] sm:$0xff]
    %v277 = vld [vmem:[#allocation2 + $0x5c8] sm:$0xff]
    %v278 = vld [vmem:[#allocation2 + $0x5d0] sm:$0xff]
    %v279 = vld [vmem:[#allocation2 + $0x5d8] sm:$0xff]
    %v280 = vld [vmem:[#allocation2 + $0x5e0] sm:$0xff]
    %v281 = vld [vmem:[#allocation2 + $0x5e8] sm:$0xff]
    %v282 = vld [vmem:[#allocation2 + $0x5f0] sm:$0xff]
    %v283 = vld [vmem:[#allocation2 + $0x5f8] sm:$0xff]
    %v284 = vld [vmem:[%s2] sm:$0x3]
    %v286 = vlaneseq
    %v287 = vshrl.u32 %v286, 7
    %v288 = vsub.s32 0, %v287
    %v289 = vrot.slane %v284, %v288
    %v290 = vlaneseq
    %v291 = vshrl.u32 %v290, 7
    %v292 = vsub.s32 1, %v291
    %v293 = vrot.slane %v284, %v292
    %296 = vmatprep.subr.mxu0 %v93
    %297 = vmatpush1.msra.mxu0 %v92
    %298 = vmatprep.subr.mxu0 %v95
    %299 = vmatpush1.msra.mxu0 %v94
    %300 = vmatprep.subr.mxu0 %v97
    %301 = vmatpush1.msra.mxu0 %v96
    %302 = vmatprep.subr.mxu0 %v99
    %303 = vmatpush1.msra.mxu0 %v98
    %304 = vmatprep.subr.mxu0 %v101
    %305 = vmatpush1.msra.mxu0 %v100
    %306 = vmatprep.subr.mxu0 %v103
    %307 = vmatpush1.msra.mxu0 %v102
    %308 = vmatprep.subr.mxu0 %v105
    %309 = vmatpush1.msra.mxu0 %v104
    %310 = vmatprep.subr.mxu0 %v107
    %311 = vmatpush1.msra.mxu0 %v106
    %312 = vmatprep.subr.mxu0 %v109
    %313 = vmatpush1.msra.mxu0 %v108
    %314 = vmatprep.subr.mxu0 %v111
    %315 = vmatpush1.msra.mxu0 %v110
    %316 = vmatprep.subr.mxu0 %v113
    %317 = vmatpush1.msra.mxu0 %v112
    %318 = vmatprep.subr.mxu0 %v115
    %319 = vmatpush1.msra.mxu0 %v114
    %320 = vmatprep.subr.mxu0 %v117
    %321 = vmatpush1.msra.mxu0 %v116
    %322 = vmatprep.subr.mxu0 %v119
    %323 = vmatpush1.msra.mxu0 %v118
    %324 = vmatprep.subr.mxu0 %v121
    %325 = vmatpush1.msra.mxu0 %v120
    %326 = vmatprep.subr.mxu0 %v123
    %327 = vmatpush1.msra.mxu0 %v122
    %328 = vmatprep.subr.mxu0 %v125
    %329 = vmatpush1.msra.mxu0 %v124
    %330 = vmatprep.subr.mxu0 %v127
    %331 = vmatpush1.msra.mxu0 %v126
    %332 = vmatprep.subr.mxu0 %v129
    %333 = vmatpush1.msra.mxu0 %v128
    %334 = vmatprep.subr.mxu0 %v131
    %335 = vmatpush1.msra.mxu0 %v130
    %336 = vmatprep.subr.mxu0 %v133
    %337 = vmatpush1.msra.mxu0 %v132
    %338 = vmatprep.subr.mxu0 %v135
    %339 = vmatpush1.msra.mxu0 %v134
    %340 = vmatprep.subr.mxu0 %v137
    %341 = vmatpush1.msra.mxu0 %v136
    %342 = vmatprep.subr.mxu0 %v139
    %343 = vmatpush1.msra.mxu0 %v138
    %344 = vmatprep.subr.mxu0 %v141
    %345 = vmatpush1.msra.mxu0 %v140
    %346 = vmatprep.subr.mxu0 %v143
    %347 = vmatpush1.msra.mxu0 %v142
    %348 = vmatprep.subr.mxu0 %v145
    %349 = vmatpush1.msra.mxu0 %v144
    %350 = vmatprep.subr.mxu0 %v147
    %351 = vmatpush1.msra.mxu0 %v146
    %352 = vmatprep.subr.mxu0 %v149
    %353 = vmatpush1.msra.mxu0 %v148
    %354 = vmatprep.subr.mxu0 %v151
    %355 = vmatpush1.msra.mxu0 %v150
    %356 = vmatprep.subr.mxu0 %v153
    %357 = vmatpush1.msra.mxu0 %v152
    %358 = vmatprep.subr.mxu0 %v155
    %359 = vmatpush1.msra.mxu0 %v154
    %360 = vmatprep.mubr.f32.mxu0 %v81
    %361 = vmatmul.mubr.f32.gmra.mrb[0].mxu0 %v80
    %v362 = vpop.f32.mrb[0].mxu0
    %v363 = vadd.f32 %v289, %v362
    %v364 = vpop.f32.mrb[0].mxu0
    %v365 = vadd.f32 %v293, %v364
    %366 = vmatprep.mubr.f32.mxu0 %v87
    %367 = vmatmul.mubr.f32.gmra.mrb[0].mxu0 %v86
    %v368 = vpop.f32.mrb[0].mxu0
    %v369 = vadd.f32 %v289, %v368
    %v370 = vpop.f32.mrb[0].mxu0
    %v371 = vadd.f32 %v293, %v370
    %372 = vdwg.mxu0
    %373 = vmatprep.subr.mxu0 %v157
    %374 = vmatpush1.msra.mxu0 %v156
    %375 = vmatprep.subr.mxu0 %v159
    %376 = vmatpush1.msra.mxu0 %v158
    %377 = vmatprep.subr.mxu0 %v161
    %378 = vmatpush1.msra.mxu0 %v160
    %379 = vmatprep.subr.mxu0 %v163
    %380 = vmatpush1.msra.mxu0 %v162
    %381 = vmatprep.subr.mxu0 %v165
    %382 = vmatpush1.msra.mxu0 %v164
    %383 = vmatprep.subr.mxu0 %v167
    %384 = vmatpush1.msra.mxu0 %v166
    %385 = vmatprep.subr.mxu0 %v169
    %386 = vmatpush1.msra.mxu0 %v168
    %387 = vmatprep.subr.mxu0 %v171
    %388 = vmatpush1.msra.mxu0 %v170
    %389 = vmatprep.subr.mxu0 %v173
    %390 = vmatpush1.msra.mxu0 %v172
    %391 = vmatprep.subr.mxu0 %v175
    %392 = vmatpush1.msra.mxu0 %v174
    %393 = vmatprep.subr.mxu0 %v177
    %394 = vmatpush1.msra.mxu0 %v176
    %395 = vmatprep.subr.mxu0 %v179
    %396 = vmatpush1.msra.mxu0 %v178
    %397 = vmatprep.subr.mxu0 %v181
    %398 = vmatpush1.msra.mxu0 %v180
    %399 = vmatprep.subr.mxu0 %v183
    %400 = vmatpush1.msra.mxu0 %v182
    %401 = vmatprep.subr.mxu0 %v185
    %402 = vmatpush1.msra.mxu0 %v184
    %403 = vmatprep.subr.mxu0 %v187
    %404 = vmatpush1.msra.mxu0 %v186
    %405 = vmatprep.subr.mxu0 %v189
    %406 = vmatpush1.msra.mxu0 %v188
    %407 = vmatprep.subr.mxu0 %v191
    %408 = vmatpush1.msra.mxu0 %v190
    %409 = vmatprep.subr.mxu0 %v193
    %410 = vmatpush1.msra.mxu0 %v192
    %411 = vmatprep.subr.mxu0 %v195
    %412 = vmatpush1.msra.mxu0 %v194
    %413 = vmatprep.subr.mxu0 %v197
    %414 = vmatpush1.msra.mxu0 %v196
    %415 = vmatprep.subr.mxu0 %v199
    %416 = vmatpush1.msra.mxu0 %v198
    %417 = vmatprep.subr.mxu0 %v201
    %418 = vmatpush1.msra.mxu0 %v200
    %419 = vmatprep.subr.mxu0 %v203
    %420 = vmatpush1.msra.mxu0 %v202
    %421 = vmatprep.subr.mxu0 %v205
    %422 = vmatpush1.msra.mxu0 %v204
    %423 = vmatprep.subr.mxu0 %v207
    %424 = vmatpush1.msra.mxu0 %v206
    %425 = vmatprep.subr.mxu0 %v209
    %426 = vmatpush1.msra.mxu0 %v208
    %427 = vmatprep.subr.mxu0 %v211
    %428 = vmatpush1.msra.mxu0 %v210
    %429 = vmatprep.subr.mxu0 %v213
    %430 = vmatpush1.msra.mxu0 %v212
    %431 = vmatprep.subr.mxu0 %v215
    %432 = vmatpush1.msra.mxu0 %v214
    %433 = vmatprep.subr.mxu0 %v217
    %434 = vmatpush1.msra.mxu0 %v216
    %435 = vmatprep.subr.mxu0 %v219
    %436 = vmatpush1.msra.mxu0 %v218
    %437 = vmatprep.mubr.f32.mxu0 %v83
    %438 = vmatmul.mubr.f32.gmra.mrb[0].mxu0 %v82
    %v439 = vpop.f32.mrb[0].mxu0
    %v440 = vadd.f32 %v363, %v439
    %v441 = vpop.f32.mrb[0].mxu0
    %v442 = vadd.f32 %v365, %v441
    %443 = vmatprep.mubr.f32.mxu0 %v89
    %444 = vmatmul.mubr.f32.gmra.mrb[0].mxu0 %v88
    %v445 = vpop.f32.mrb[0].mxu0
    %v446 = vadd.f32 %v369, %v445
    %v447 = vpop.f32.mrb[0].mxu0
    %v448 = vadd.f32 %v371, %v447
    %449 = vdwg.mxu0
    %450 = vmatprep.subr.mxu0 %v221
    %451 = vmatpush1.msra.mxu0 %v220
    %452 = vmatprep.subr.mxu0 %v223
    %453 = vmatpush1.msra.mxu0 %v222
    %454 = vmatprep.subr.mxu0 %v225
    %455 = vmatpush1.msra.mxu0 %v224
    %456 = vmatprep.subr.mxu0 %v227
    %457 = vmatpush1.msra.mxu0 %v226
    %458 = vmatprep.subr.mxu0 %v229
    %459 = vmatpush1.msra.mxu0 %v228
    %460 = vmatprep.subr.mxu0 %v231
    %461 = vmatpush1.msra.mxu0 %v230
    %462 = vmatprep.subr.mxu0 %v233
    %463 = vmatpush1.msra.mxu0 %v232
    %464 = vmatprep.subr.mxu0 %v235
    %465 = vmatpush1.msra.mxu0 %v234
    %466 = vmatprep.subr.mxu0 %v237
    %467 = vmatpush1.msra.mxu0 %v236
    %468 = vmatprep.subr.mxu0 %v239
    %469 = vmatpush1.msra.mxu0 %v238
    %470 = vmatprep.subr.mxu0 %v241
    %471 = vmatpush1.msra.mxu0 %v240
    %472 = vmatprep.subr.mxu0 %v243
    %473 = vmatpush1.msra.mxu0 %v242
    %474 = vmatprep.subr.mxu0 %v245
    %475 = vmatpush1.msra.mxu0 %v244
    %476 = vmatprep.subr.mxu0 %v247
    %477 = vmatpush1.msra.mxu0 %v246
    %478 = vmatprep.subr.mxu0 %v249
    %479 = vmatpush1.msra.mxu0 %v248
    %480 = vmatprep.subr.mxu0 %v251
    %481 = vmatpush1.msra.mxu0 %v250
    %482 = vmatprep.subr.mxu0 %v253
    %483 = vmatpush1.msra.mxu0 %v252
    %484 = vmatprep.subr.mxu0 %v255
    %485 = vmatpush1.msra.mxu0 %v254
    %486 = vmatprep.subr.mxu0 %v257
    %487 = vmatpush1.msra.mxu0 %v256
    %488 = vmatprep.subr.mxu0 %v259
    %489 = vmatpush1.msra.mxu0 %v258
    %490 = vmatprep.subr.mxu0 %v261
    %491 = vmatpush1.msra.mxu0 %v260
    %492 = vmatprep.subr.mxu0 %v263
    %493 = vmatpush1.msra.mxu0 %v262
    %494 = vmatprep.subr.mxu0 %v265
    %495 = vmatpush1.msra.mxu0 %v264
    %496 = vmatprep.subr.mxu0 %v267
    %497 = vmatpush1.msra.mxu0 %v266
    %498 = vmatprep.subr.mxu0 %v269
    %499 = vmatpush1.msra.mxu0 %v268
    %500 = vmatprep.subr.mxu0 %v271
    %501 = vmatpush1.msra.mxu0 %v270
    %502 = vmatprep.subr.mxu0 %v273
    %503 = vmatpush1.msra.mxu0 %v272
    %504 = vmatprep.subr.mxu0 %v275
    %505 = vmatpush1.msra.mxu0 %v274
    %506 = vmatprep.subr.mxu0 %v277
    %507 = vmatpush1.msra.mxu0 %v276
    %508 = vmatprep.subr.mxu0 %v279
    %509 = vmatpush1.msra.mxu0 %v278
    %510 = vmatprep.subr.mxu0 %v281
    %511 = vmatpush1.msra.mxu0 %v280
    %512 = vmatprep.subr.mxu0 %v283
    %513 = vmatpush1.msra.mxu0 %v282
    %514 = vmatprep.mubr.f32.mxu0 %v85
    %515 = vmatmul.mubr.f32.gmra.mrb[0].mxu0 %v84
    %v516 = vpop.f32.mrb[0].mxu0
    %v517 = vadd.f32 %v440, %v516
    %v518 = vpop.f32.mrb[0].mxu0
    %v519 = vadd.f32 %v442, %v518
    %520 = vmatprep.mubr.f32.mxu0 %v91
    %521 = vmatmul.mubr.f32.gmra.mrb[0].mxu0 %v90
    %v522 = vpop.f32.mrb[0].mxu0
    %v523 = vadd.f32 %v446, %v522
    %v524 = vpop.f32.mrb[0].mxu0
    %v525 = vadd.f32 %v448, %v524
    %526 = vdwg.mxu0
    %v527 = vmax.f32 %v517, 0.0
    %v528 = vmax.f32 %v519, 0.0
    %v529 = vmax.f32 %v523, 0.0
    %v530 = vmax.f32 %v525, 0.0
    %v531 = vadd.f32 %v527, %v528
    %532 = vadd.xlane.f32.xlu0 %v531
    %v533 = vpop.xlane.xlu0 %532
    %v534 = vadd.f32 %v529, %v530
    %535 = vadd.xlane.f32.xlu0 %v534
    %v536 = vpop.xlane.xlu0 %535
    %v537 = vrcp.pop 256.0
    %v538 = vmul.f32 %v533, %v537
    %v539 = vmul.f32 %v536, %v537
    %v540 = vmul.f32 %v527, %v527
    %v541 = vmul.f32 %v528, %v528
    %v542 = vmul.f32 %v529, %v529
    %v543 = vmul.f32 %v530, %v530
    %v544 = vadd.f32 %v540, %v541
    %545 = vadd.xlane.f32.xlu0 %v544
    %v546 = vpop.xlane.xlu0 %545
    %v547 = vadd.f32 %v542, %v543
    %548 = vadd.xlane.f32.xlu0 %v547
    %v549 = vpop.xlane.xlu0 %548
    %v550 = vmul.f32 %v546, %v537
    %v551 = vmul.f32 %v549, %v537
    %v552 = vmul.f32 %v538, %v538
    %v553 = vmul.f32 %v539, %v539
    %v554 = vsub.f32 %v550, %v552
    %v555 = vsub.f32 %v551, %v553
    %v556 = vmax.f32 %v554, 0.0
    %v557 = vmax.f32 %v555, 0.0
    %v558 = vadd.f32 %v556, 1e-05
    %v559 = vadd.f32 %v557, 1e-05
    %v560 = vrsqrt.pop %v558
    %v561 = vrsqrt.pop %v559
    %v562 = vsub.f32 %v527, %v538
    %v563 = vsub.f32 %v528, %v538
    %v564 = vsub.f32 %v529, %v539
    %v565 = vsub.f32 %v530, %v539
    %v566 = vmul.f32 %v562, %v560
    %v567 = vmul.f32 %v563, %v560
    %v568 = vmul.f32 %v564, %v561
    %v569 = vmul.f32 %v565, %v561
    %v570 = vld [vmem:[%s3] sm:$0x3]
    %v572 = vlaneseq
    %v573 = vshrl.u32 %v572, 7
    %v574 = vsub.s32 0, %v573
    %v575 = vrot.slane %v570, %v574
    %v576 = vlaneseq
    %v577 = vshrl.u32 %v576, 7
    %v578 = vsub.s32 1, %v577
    %v579 = vrot.slane %v570, %v578
    %v582 = vmul.f32 %v566, %v575
    %v583 = vmul.f32 %v567, %v579
    %v584 = vmul.f32 %v568, %v575
    %v585 = vmul.f32 %v569, %v579
    %v586 = vld [vmem:[%s4] sm:$0x3]
    %v588 = vlaneseq
    %v589 = vshrl.u32 %v588, 7
    %v590 = vsub.s32 0, %v589
    %v591 = vrot.slane %v586, %v590
    %v592 = vlaneseq
    %v593 = vshrl.u32 %v592, 7
    %v594 = vsub.s32 1, %v593
    %v595 = vrot.slane %v586, %v594
    %v598 = vadd.f32 %v582, %v591
    %v599 = vadd.f32 %v583, %v595
    %v600 = vadd.f32 %v584, %v591
    %v601 = vadd.f32 %v585, %v595
    %v602 = vld [vmem:[#allocation5] sm:$0xff]
    %v603 = vld [vmem:[#allocation5 + $0x8] sm:$0xff]
    %v604 = vld [vmem:[#allocation5 + $0x10] sm:$0xff]
    %v605 = vld [vmem:[#allocation5 + $0x18] sm:$0xff]
    %v606 = vld [vmem:[#allocation5 + $0x20] sm:$0xff]
    %v607 = vld [vmem:[#allocation5 + $0x28] sm:$0xff]
    %v608 = vld [vmem:[#allocation5 + $0x30] sm:$0xff]
    %v609 = vld [vmem:[#allocation5 + $0x38] sm:$0xff]
    %v610 = vld [vmem:[#allocation5 + $0x40] sm:$0xff]
    %v611 = vld [vmem:[#allocation5 + $0x48] sm:$0xff]
    %v612 = vld [vmem:[#allocation5 + $0x50] sm:$0xff]
    %v613 = vld [vmem:[#allocation5 + $0x58] sm:$0xff]
    %v614 = vld [vmem:[#allocation5 + $0x60] sm:$0xff]
    %v615 = vld [vmem:[#allocation5 + $0x68] sm:$0xff]
    %v616 = vld [vmem:[#allocation5 + $0x70] sm:$0xff]
    %v617 = vld [vmem:[#allocation5 + $0x78] sm:$0xff]
    %v618 = vld [vmem:[#allocation5 + $0x80] sm:$0xff]
    %v619 = vld [vmem:[#allocation5 + $0x88] sm:$0xff]
    %v620 = vld [vmem:[#allocation5 + $0x90] sm:$0xff]
    %v621 = vld [vmem:[#allocation5 + $0x98] sm:$0xff]
    %v622 = vld [vmem:[#allocation5 + $0xa0] sm:$0xff]
    %v623 = vld [vmem:[#allocation5 + $0xa8] sm:$0xff]
    %v624 = vld [vmem:[#allocation5 + $0xb0] sm:$0xff]
    %v625 = vld [vmem:[#allocation5 + $0xb8] sm:$0xff]
    %v626 = vld [vmem:[#allocation5 + $0xc0] sm:$0xff]
    %v627 = vld [vmem:[#allocation5 + $0xc8] sm:$0xff]
    %v628 = vld [vmem:[#allocation5 + $0xd0] sm:$0xff]
    %v629 = vld [vmem:[#allocation5 + $0xd8] sm:$0xff]
    %v630 = vld [vmem:[#allocation5 + $0xe0] sm:$0xff]
    %v631 = vld [vmem:[#allocation5 + $0xe8] sm:$0xff]
    %v632 = vld [vmem:[#allocation5 + $0xf0] sm:$0xff]
    %v633 = vld [vmem:[#allocation5 + $0xf8] sm:$0xff]
    %v634 = vld [vmem:[#allocation5 + $0x100] sm:$0xff]
    %v635 = vld [vmem:[#allocation5 + $0x108] sm:$0xff]
    %v636 = vld [vmem:[#allocation5 + $0x110] sm:$0xff]
    %v637 = vld [vmem:[#allocation5 + $0x118] sm:$0xff]
    %v638 = vld [vmem:[#allocation5 + $0x120] sm:$0xff]
    %v639 = vld [vmem:[#allocation5 + $0x128] sm:$0xff]
    %v640 = vld [vmem:[#allocation5 + $0x130] sm:$0xff]
    %v641 = vld [vmem:[#allocation5 + $0x138] sm:$0xff]
    %v642 = vld [vmem:[#allocation5 + $0x140] sm:$0xff]
    %v643 = vld [vmem:[#allocation5 + $0x148] sm:$0xff]
    %v644 = vld [vmem:[#allocation5 + $0x150] sm:$0xff]
    %v645 = vld [vmem:[#allocation5 + $0x158] sm:$0xff]
    %v646 = vld [vmem:[#allocation5 + $0x160] sm:$0xff]
    %v647 = vld [vmem:[#allocation5 + $0x168] sm:$0xff]
    %v648 = vld [vmem:[#allocation5 + $0x170] sm:$0xff]
    %v649 = vld [vmem:[#allocation5 + $0x178] sm:$0xff]
    %v650 = vld [vmem:[#allocation5 + $0x180] sm:$0xff]
    %v651 = vld [vmem:[#allocation5 + $0x188] sm:$0xff]
    %v652 = vld [vmem:[#allocation5 + $0x190] sm:$0xff]
    %v653 = vld [vmem:[#allocation5 + $0x198] sm:$0xff]
    %v654 = vld [vmem:[#allocation5 + $0x1a0] sm:$0xff]
    %v655 = vld [vmem:[#allocation5 + $0x1a8] sm:$0xff]
    %v656 = vld [vmem:[#allocation5 + $0x1b0] sm:$0xff]
    %v657 = vld [vmem:[#allocation5 + $0x1b8] sm:$0xff]
    %v658 = vld [vmem:[#allocation5 + $0x1c0] sm:$0xff]
    %v659 = vld [vmem:[#allocation5 + $0x1c8] sm:$0xff]
    %v660 = vld [vmem:[#allocation5 + $0x1d0] sm:$0xff]
    %v661 = vld [vmem:[#allocation5 + $0x1d8] sm:$0xff]
    %v662 = vld [vmem:[#allocation5 + $0x1e0] sm:$0xff]
    %v663 = vld [vmem:[#allocation5 + $0x1e8] sm:$0xff]
    %v664 = vld [vmem:[#allocation5 + $0x1f0] sm:$0xff]
    %v665 = vld [vmem:[#allocation5 + $0x1f8] sm:$0xff]
    %v666 = vld [vmem:[%s6] sm:$0x3]
    %v668 = vlaneseq
    %v669 = vshrl.u32 %v668, 7
    %v670 = vsub.s32 0, %v669
    %v671 = vrot.slane %v666, %v670
    %v672 = vlaneseq
    %v673 = vshrl.u32 %v672, 7
    %v674 = vsub.s32 1, %v673
    %v675 = vrot.slane %v666, %v674
    %678 = vmatprep.subr.mxu0 %v603
    %679 = vmatpush1.msra.mxu0 %v602
    %680 = vmatprep.subr.mxu0 %v605
    %681 = vmatpush1.msra.mxu0 %v604
    %682 = vmatprep.subr.mxu0 %v607
    %683 = vmatpush1.msra.mxu0 %v606
    %684 = vmatprep.subr.mxu0 %v609
    %685 = vmatpush1.msra.mxu0 %v608
    %686 = vmatprep.subr.mxu0 %v611
    %687 = vmatpush1.msra.mxu0 %v610
    %688 = vmatprep.subr.mxu0 %v613
    %689 = vmatpush1.msra.mxu0 %v612
    %690 = vmatprep.subr.mxu0 %v615
    %691 = vmatpush1.msra.mxu0 %v614
    %692 = vmatprep.subr.mxu0 %v617
    %693 = vmatpush1.msra.mxu0 %v616
    %694 = vmatprep.subr.mxu0 %v619
    %695 = vmatpush1.msra.mxu0 %v618
    %696 = vmatprep.subr.mxu0 %v621
    %697 = vmatpush1.msra.mxu0 %v620
    %698 = vmatprep.subr.mxu0 %v623
    %699 = vmatpush1.msra.mxu0 %v622
    %700 = vmatprep.subr.mxu0 %v625
    %701 = vmatpush1.msra.mxu0 %v624
    %702 = vmatprep.subr.mxu0 %v627
    %703 = vmatpush1.msra.mxu0 %v626
    %704 = vmatprep.subr.mxu0 %v629
    %705 = vmatpush1.msra.mxu0 %v628
    %706 = vmatprep.subr.mxu0 %v631
    %707 = vmatpush1.msra.mxu0 %v630
    %708 = vmatprep.subr.mxu0 %v633
    %709 = vmatpush1.msra.mxu0 %v632
    %710 = vmatprep.subr.mxu0 %v635
    %711 = vmatpush1.msra.mxu0 %v634
    %712 = vmatprep.subr.mxu0 %v637
    %713 = vmatpush1.msra.mxu0 %v636
    %714 = vmatprep.subr.mxu0 %v639
    %715 = vmatpush1.msra.mxu0 %v638
    %716 = vmatprep.subr.mxu0 %v641
    %717 = vmatpush1.msra.mxu0 %v640
    %718 = vmatprep.subr.mxu0 %v643
    %719 = vmatpush1.msra.mxu0 %v642
    %720 = vmatprep.subr.mxu0 %v645
    %721 = vmatpush1.msra.mxu0 %v644
    %722 = vmatprep.subr.mxu0 %v647
    %723 = vmatpush1.msra.mxu0 %v646
    %724 = vmatprep.subr.mxu0 %v649
    %725 = vmatpush1.msra.mxu0 %v648
    %726 = vmatprep.subr.mxu0 %v651
    %727 = vmatpush1.msra.mxu0 %v650
    %728 = vmatprep.subr.mxu0 %v653
    %729 = vmatpush1.msra.mxu0 %v652
    %730 = vmatprep.subr.mxu0 %v655
    %731 = vmatpush1.msra.mxu0 %v654
    %732 = vmatprep.subr.mxu0 %v657
    %733 = vmatpush1.msra.mxu0 %v656
    %734 = vmatprep.subr.mxu0 %v659
    %735 = vmatpush1.msra.mxu0 %v658
    %736 = vmatprep.subr.mxu0 %v661
    %737 = vmatpush1.msra.mxu0 %v660
    %738 = vmatprep.subr.mxu0 %v663
    %739 = vmatpush1.msra.mxu0 %v662
    %740 = vmatprep.subr.mxu0 %v665
    %741 = vmatpush1.msra.mxu0 %v664
    %742 = vmatprep.mubr.f32.mxu0 %v599
    %743 = vmatmul.mubr.f32.gmra.mrb[0].mxu0 %v598
    %v744 = vpop.f32.mrb[0].mxu0
    %v745 = vadd.f32 %v671, %v744
    %v746 = vpop.f32.mrb[0].mxu0
    %v747 = vadd.f32 %v675, %v746
    %748 = vmatprep.mubr.f32.mxu0 %v601
    %749 = vmatmul.mubr.f32.gmra.mrb[0].mxu0 %v600
    %v750 = vpop.f32.mrb[0].mxu0
    %v751 = vadd.f32 %v671, %v750
    %v752 = vpop.f32.mrb[0].mxu0
    %v753 = vadd.f32 %v675, %v752
    %754 = vdwg.mxu0
    %v755 = vmax.f32 %v745, 0.0
    %v756 = vmax.f32 %v747, 0.0
    %v757 = vmax.f32 %v751, 0.0
    %v758 = vmax.f32 %v753, 0.0
    %v759 = vadd.f32 %v755, %v756
    %760 = vadd.xlane.f32.xlu0 %v759
    %v761 = vpop.xlane.xlu0 %760
    %v762 = vadd.f32 %v757, %v758
    %763 = vadd.xlane.f32.xlu0 %v762
    %v764 = vpop.xlane.xlu0 %763
    %v765 = vmul.f32 %v761, %v537
    %v766 = vmul.f32 %v764, %v537
    %v767 = vmul.f32 %v755, %v755
    %v768 = vmul.f32 %v756, %v756
    %v769 = vmul.f32 %v757, %v757
    %v770 = vmul.f32 %v758, %v758
    %v771 = vadd.f32 %v767, %v768
    %772 = vadd.xlane.f32.xlu0 %v771
    %v773 = vpop.xlane.xlu0 %772
    %v774 = vadd.f32 %v769, %v770
    %775 = vadd.xlane.f32.xlu0 %v774
    %v776 = vpop.xlane.xlu0 %775
    %v777 = vmul.f32 %v773, %v537
    %v778 = vmul.f32 %v776, %v537
    %v779 = vmul.f32 %v765, %v765
    %v780 = vmul.f32 %v766, %v766
    %v781 = vsub.f32 %v777, %v779
    %v782 = vsub.f32 %v778, %v780
    %v783 = vmax.f32 %v781, 0.0
    %v784 = vmax.f32 %v782, 0.0
    %v785 = vadd.f32 %v783, 1e-05
    %v786 = vadd.f32 %v784, 1e-05
    %v787 = vrsqrt.pop %v785
    %v788 = vrsqrt.pop %v786
    %v789 = vsub.f32 %v755, %v765
    %v790 = vsub.f32 %v756, %v765
    %v791 = vsub.f32 %v757, %v766
    %v792 = vsub.f32 %v758, %v766
    %v793 = vmul.f32 %v789, %v787
    %v794 = vmul.f32 %v790, %v787
    %v795 = vmul.f32 %v791, %v788
    %v796 = vmul.f32 %v792, %v788
    %v797 = vld [vmem:[%s7] sm:$0x3]
    %v799 = vlaneseq
    %v800 = vshrl.u32 %v799, 7
    %v801 = vsub.s32 0, %v800
    %v802 = vrot.slane %v797, %v801
    %v803 = vlaneseq
    %v804 = vshrl.u32 %v803, 7
    %v805 = vsub.s32 1, %v804
    %v806 = vrot.slane %v797, %v805
    %v809 = vmul.f32 %v793, %v802
    %v810 = vmul.f32 %v794, %v806
    %v811 = vmul.f32 %v795, %v802
    %v812 = vmul.f32 %v796, %v806
    %v813 = vld [vmem:[%s8] sm:$0x3]
    %v815 = vlaneseq
    %v816 = vshrl.u32 %v815, 7
    %v817 = vsub.s32 0, %v816
    %v818 = vrot.slane %v813, %v817
    %v819 = vlaneseq
    %v820 = vshrl.u32 %v819, 7
    %v821 = vsub.s32 1, %v820
    %v822 = vrot.slane %v813, %v821
    %v825 = vadd.f32 %v809, %v818
    %v826 = vadd.f32 %v810, %v822
    %v827 = vadd.f32 %v811, %v818
    %v828 = vadd.f32 %v812, %v822
    %v829 = vld [vmem:[#allocation7] sm:$0xff]
    %v830 = vld [vmem:[#allocation7 + $0x8] sm:$0xff]
    %v831 = vld [vmem:[#allocation7 + $0x10] sm:$0xff]
    %v832 = vld [vmem:[#allocation7 + $0x18] sm:$0xff]
    %v833 = vld [vmem:[#allocation7 + $0x20] sm:$0xff]
    %v834 = vld [vmem:[#allocation7 + $0x28] sm:$0xff]
    %v835 = vld [vmem:[#allocation7 + $0x30] sm:$0xff]
    %v836 = vld [vmem:[#allocation7 + $0x38] sm:$0xff]
    %v837 = vld [vmem:[#allocation7 + $0x40] sm:$0xff]
    %v838 = vld [vmem:[#allocation7 + $0x48] sm:$0xff]
    %v839 = vld [vmem:[#allocation7 + $0x50] sm:$0xff]
    %v840 = vld [vmem:[#allocation7 + $0x58] sm:$0xff]
    %v841 = vld [vmem:[#allocation7 + $0x60] sm:$0xff]
    %v842 = vld [vmem:[#allocation7 + $0x68] sm:$0xff]
    %v843 = vld [vmem:[#allocation7 + $0x70] sm:$0xff]
    %v844 = vld [vmem:[#allocation7 + $0x78] sm:$0xff]
    %v845 = vld [vmem:[#allocation7 + $0x80] sm:$0xff]
    %v846 = vld [vmem:[#allocation7 + $0x88] sm:$0xff]
    %v847 = vld [vmem:[#allocation7 + $0x90] sm:$0xff]
    %v848 = vld [vmem:[#allocation7 + $0x98] sm:$0xff]
    %v849 = vld [vmem:[#allocation7 + $0xa0] sm:$0xff]
    %v850 = vld [vmem:[#allocation7 + $0xa8] sm:$0xff]
    %v851 = vld [vmem:[#allocation7 + $0xb0] sm:$0xff]
    %v852 = vld [vmem:[#allocation7 + $0xb8] sm:$0xff]
    %v853 = vld [vmem:[#allocation7 + $0xc0] sm:$0xff]
    %v854 = vld [vmem:[#allocation7 + $0xc8] sm:$0xff]
    %v855 = vld [vmem:[#allocation7 + $0xd0] sm:$0xff]
    %v856 = vld [vmem:[#allocation7 + $0xd8] sm:$0xff]
    %v857 = vld [vmem:[#allocation7 + $0xe0] sm:$0xff]
    %v858 = vld [vmem:[#allocation7 + $0xe8] sm:$0xff]
    %v859 = vld [vmem:[#allocation7 + $0xf0] sm:$0xff]
    %v860 = vld [vmem:[#allocation7 + $0xf8] sm:$0xff]
    %v861 = vld [vmem:[%s10] sm:$0x1]
    %v863 = vlaneseq
    %v864 = vshrl.u32 %v863, 7
    %v865 = vsub.s32 0, %v864
    %v866 = vrot.slane %v861, %v865
    %868 = vmatprep.subr.mxu0 0.0
    %869 = vmatpush1.msra.mxu0 %v829
    %870 = vmatprep.subr.mxu0 0.0
    %871 = vmatpush1.msra.mxu0 %v830
    %872 = vmatprep.subr.mxu0 0.0
    %873 = vmatpush1.msra.mxu0 %v831
    %874 = vmatprep.subr.mxu0 0.0
    %875 = vmatpush1.msra.mxu0 %v832
    %876 = vmatprep.subr.mxu0 0.0
    %877 = vmatpush1.msra.mxu0 %v833
    %878 = vmatprep.subr.mxu0 0.0
    %879 = vmatpush1.msra.mxu0 %v834
    %880 = vmatprep.subr.mxu0 0.0
    %881 = vmatpush1.msra.mxu0 %v835
    %882 = vmatprep.subr.mxu0 0.0
    %883 = vmatpush1.msra.mxu0 %v836
    %884 = vmatprep.subr.mxu0 0.0
    %885 = vmatpush1.msra.mxu0 %v837
    %886 = vmatprep.subr.mxu0 0.0
    %887 = vmatpush1.msra.mxu0 %v838
    %888 = vmatprep.subr.mxu0 0.0
    %889 = vmatpush1.msra.mxu0 %v839
    %890 = vmatprep.subr.mxu0 0.0
    %891 = vmatpush1.msra.mxu0 %v840
    %892 = vmatprep.subr.mxu0 0.0
    %893 = vmatpush1.msra.mxu0 %v841
    %894 = vmatprep.subr.mxu0 0.0
    %895 = vmatpush1.msra.mxu0 %v842
    %896 = vmatprep.subr.mxu0 0.0
    %897 = vmatpush1.msra.mxu0 %v843
    %898 = vmatprep.subr.mxu0 0.0
    %899 = vmatpush1.msra.mxu0 %v844
    %900 = vmatprep.subr.mxu0 0.0
    %901 = vmatpush1.msra.mxu0 %v845
    %902 = vmatprep.subr.mxu0 0.0
    %903 = vmatpush1.msra.mxu0 %v846
    %904 = vmatprep.subr.mxu0 0.0
    %905 = vmatpush1.msra.mxu0 %v847
    %906 = vmatprep.subr.mxu0 0.0
    %907 = vmatpush1.msra.mxu0 %v848
    %908 = vmatprep.subr.mxu0 0.0
    %909 = vmatpush1.msra.mxu0 %v849
    %910 = vmatprep.subr.mxu0 0.0
    %911 = vmatpush1.msra.mxu0 %v850
    %912 = vmatprep.subr.mxu0 0.0
    %913 = vmatpush1.msra.mxu0 %v851
    %914 = vmatprep.subr.mxu0 0.0
    %915 = vmatpush1.msra.mxu0 %v852
    %916 = vmatprep.subr.mxu0 0.0
    %917 = vmatpush1.msra.mxu0 %v853
    %918 = vmatprep.subr.mxu0 0.0
    %919 = vmatpush1.msra.mxu0 %v854
    %920 = vmatprep.subr.mxu0 0.0
    %921 = vmatpush1.msra.mxu0 %v855
    %922 = vmatprep.subr.mxu0 0.0
    %923 = vmatpush1.msra.mxu0 %v856
    %924 = vmatprep.subr.mxu0 0.0
    %925 = vmatpush1.msra.mxu0 %v857
    %926 = vmatprep.subr.mxu0 0.0
    %927 = vmatpush1.msra.mxu0 %v858
    %928 = vmatprep.subr.mxu0 0.0
    %929 = vmatpush1.msra.mxu0 %v859
    %930 = vmatprep.subr.mxu0 0.0
    %931 = vmatpush1.msra.mxu0 %v860
    %932 = vmatprep.mubr.f32.mxu0 %v826
    %933 = vmatmul.mubr.f32.gmra.mrb[0].mxu0 %v825
    %v934 = vpop.f32.mrb[0].mxu0
    %v935 = vadd.f32 %v866, %v934
    %v936 = vpop.f32.mrb[0].mxu0
    %937 = vmatprep.mubr.f32.mxu0 %v828
    %938 = vmatmul.mubr.f32.gmra.mrb[0].mxu0 %v827
    %v939 = vpop.f32.mrb[0].mxu0
    %v940 = vadd.f32 %v866, %v939
    %v941 = vpop.f32.mrb[0].mxu0
    %942 = vdwg.mxu0
    %943 = vst [vmem:[#allocation8] sm:$0xff] %v80
    %944 = vst [vmem:[#allocation8 + $0x8] sm:$0xff] %v81
    %945 = vst [vmem:[#allocation8 + $0x10] sm:$0xff] %v82
    %946 = vst [vmem:[#allocation8 + $0x18] sm:$0xff] %v83
    %947 = vst [vmem:[#allocation8 + $0x20] sm:$0xff] %v84
    %948 = vst [vmem:[#allocation8 + $0x28] sm:$0xff] %v85
    %949 = vst [vmem:[#allocation8 + $0x38] sm:$0xff] %v86
    %950 = vst [vmem:[#allocation8 + $0x40] sm:$0xff] %v87
    %951 = vst [vmem:[#allocation8 + $0x48] sm:$0xff] %v88
    %952 = vst [vmem:[#allocation8 + $0x50] sm:$0xff] %v89
    %953 = vst [vmem:[#allocation8 + $0x58] sm:$0xff] %v90
    %954 = vst [vmem:[#allocation8 + $0x60] sm:$0xff] %v91
    %955 = vst [vmem:[#allocation8 + $0x30] sm:$0xff] %v935
    %956 = vst [vmem:[#allocation8 + $0x68] sm:$0xff] %v940
    // Predicated region
    $region58: #{append_net_forward.1} parent=1 // pred_check
      _
    $region59: #{append_net_forward.1} parent=1 // pred_check_branch
      %958 = sbr.rel (0) target = $region61
    $region60: #{append_net_forward.1} parent=1 // pred_region
      %s960 = ssub.s32 1792, 1792
      %961 = vsyncadd [#allocation4], %s960
      %s962 = sshll.u32 [#allocation8], 4
      %s963 = int_to_ptr.vmem [resolvable:$true] %s962
      %968 = dma.vmem_to_hbm [thread:$0]  %s963, 1792, %s11, [#allocation4], 896, 896, 56
    $region61: #{append_net_forward.1} parent=1 // pred_fallthru
      _
    // Predicated region
    $region62: #{append_net_forward.1} parent=1 // pred_check
      _
    $region63: #{append_net_forward.1} parent=1 // pred_check_branch
      %970 = sbr.rel (0) target = $region65
    $region64: #{append_net_forward.1} parent=1 // pred_region
      %971 = dma.done [#allocation4], 1792
    $region65: #{append_net_forward.1} parent=1 // pred_fallthru
      _
    %972 = vsyncpa [#allocation3], 1
    %973 = vsyncpa [#allocation6], 1
    %974 = vsyncpa [#allocation4], 1

</llo_original>
